<compile_context>
chip_gen: v7x
topology: tpu7x:2x2x1
jax: 0.10.0
libtpu: 0.0.40
codegen_flags: <defaults>
</compile_context>

<pallas_src>
import numpy as np
import jax
import jax.numpy as jnp
from jax.experimental import pallas as pl
from jax.experimental.pallas import tpu as pltpu


# ----------------------------------------------------------------------------
# Host-side (glue): separable bicubic-antialias interpolation weight matrices
# ----------------------------------------------------------------------------
def _cubic_aa(x, a=-0.5):
    x = abs(x)
    if x < 1.0:
        return ((a + 2.0) * x - (a + 3.0)) * x * x + 1.0
    if x < 2.0:
        return (((x - 5.0) * x + 8.0) * x - 4.0) * a
    return 0.0


def _bicubic_aa_weights(in_size, out_size, align_corners=True):
    """Dense [out_size, in_size] row-stochastic resampling matrix.

    Mirrors ATen HelperInterpCubic with antialias=True (PIL-style a=-0.5 kernel,
    clipped+renormalized taps). align_corners only affects the scale.
    """
    # TODO(synk): verify center/tap formula against torch._upsample_bicubic2d_aa
    # numerically (align_corners=True AA path) when a torch runtime is available.
    if align_corners:
        scale = (in_size - 1) / (out_size - 1) if out_size > 1 else 0.0
    else:
        scale = in_size / out_size
    support = 2.0 * scale if scale >= 1.0 else 2.0      # interp_size/2 = 2 for cubic
    invscale = 1.0 / scale if scale >= 1.0 else 1.0
    mat = np.zeros((out_size, in_size), dtype=np.float32)
    for i in range(out_size):
        center = scale * (i + 0.5)
        xmin = max(int(center - support + 0.5), 0)
        xmax = min(int(center + support + 0.5), in_size)
        ws = np.array(
            [_cubic_aa((j - center + 0.5) * invscale) for j in range(xmin, xmax)],
            dtype=np.float64,
        )
        tot = ws.sum()
        if tot != 0.0:
            ws = ws / tot
        mat[i, xmin:xmax] = ws.astype(np.float32)
    return mat


# ----------------------------------------------------------------------------
# Pallas kernel: single grid step, whole batch + all channels fused
# ----------------------------------------------------------------------------
def _pointwise_op_kernel(x_ref, kron_ref, w_ref, b_ref, o_ref):
    # x_ref   : [B*C_in,  H*W]        flattened (batch, channel) x spatial, lane-dense
    # kron_ref: [H*W,     dim1*dim2]  kron(Wh, Ww)^T fused separable AA resize
    # w_ref   : [B*C_out, B*C_in]     block-diagonal 1x1 conv weight kron(I_B, W)
    # b_ref   : [B*C_out, 1]          tiled conv bias
    # o_ref   : [B*C_out, dim1*dim2]  lane-dense output slab
    # Resize first (C_in < C_out): one MXU matmul, K=H*W, N=dim1*dim2.
    r = jnp.dot(x_ref[...], kron_ref[...], preferred_element_type=jnp.float32)
    # Batched 1x1 conv as a single block-diagonal matmul + bias (rows of the AA
    # matrices sum to 1, so adding the bias after the resize is exact).
    out = jnp.dot(w_ref[...], r, preferred_element_type=jnp.float32) + b_ref[...]
    o_ref[...] = out.astype(o_ref.dtype)


# ----------------------------------------------------------------------------
# Wrapper
# ----------------------------------------------------------------------------
def pointwise_op_2d(x, conv_w, conv_b, dim1, dim2):
    """x: [B, C_in, H, W]; conv_w: [C_out, C_in, 1, 1]; conv_b: [C_out].

    Returns [B, C_out, dim1, dim2] float32 (NCHW), same as the PyTorch module.
    """
    B, C_in, H, W = x.shape
    C_out = conv_w.shape[0]
    HW = H * W
    D = dim1 * dim2

    wh = _bicubic_aa_weights(H, dim1, align_corners=True)                 # [dim1, H]
    ww = _bicubic_aa_weights(W, dim2, align_corners=True)                 # [dim2, W]
    # Fused separable resize matrix: R = X_flat @ kron(Wh, Ww)^T.
    # Size = H*W*dim1*dim2*4 bytes (1 MiB here); for much larger problems switch
    # back to the batched two-matmul separable form to stay within VMEM (v7x).
    kron_t = jnp.asarray(np.kron(wh, ww).T)                               # [HW, D]

    x_flat = x.astype(jnp.float32).reshape(B * C_in, HW)                  # lane-dense input
    w2 = conv_w.astype(jnp.float32).reshape(C_out, C_in)
    w_blk = jnp.kron(jnp.eye(B, dtype=jnp.float32), w2)                   # [B*C_out, B*C_in]
    b_tiled = jnp.tile(conv_b.astype(jnp.float32).reshape(C_out, 1), (B, 1))

    out = pl.pallas_call(
        _pointwise_op_kernel,
        out_shape=jax.ShapeDtypeStruct((B * C_out, D), jnp.float32),
        grid_spec=pltpu.PrefetchScalarGridSpec(
            num_scalar_prefetch=0,
            grid=(1,),
            in_specs=[
                pl.BlockSpec((B * C_in, HW), lambda i: (0, 0)),
                pl.BlockSpec((HW, D), lambda i: (0, 0)),
                pl.BlockSpec((B * C_out, B * C_in), lambda i: (0, 0)),
                pl.BlockSpec((B * C_out, 1), lambda i: (0, 0)),
            ],
            out_specs=pl.BlockSpec((B * C_out, D), lambda i: (0, 0)),
        ),
        compiler_params=pltpu.CompilerParams(
            dimension_semantics=("arbitrary",)),
    )(x_flat, kron_t, w_blk, b_tiled)
    return out.reshape(B, C_out, dim1, dim2)


# ----------------------------------------------------------------------------
# Demo
# ----------------------------------------------------------------------------
if __name__ == "__main__":
    # Module config (synthetic, deterministic): in_codim=4, out_codim=8,
    # dim1=dim2=32 target size; input spatial 16x16, batch 2.
    B, C_in, C_out = 2, 4, 8
    H = W = 16
    dim1 = dim2 = 32

    key = jax.random.PRNGKey(0)
    k_w, k_b, k_x = jax.random.split(key, 3)

    # Deterministic params mimicking nn.Conv2d default init bounds (1/sqrt(fan_in)).
    bound = 1.0 / np.sqrt(C_in * 1 * 1)
    conv_w = jax.random.uniform(k_w, (C_out, C_in, 1, 1), jnp.float32, -bound, bound)
    conv_b = jax.random.uniform(k_b, (C_out,), jnp.float32, -bound, bound)
    x = jax.random.normal(k_x, (B, C_in, H, W), jnp.float32)

    out = pointwise_op_2d(x, conv_w, conv_b, dim1, dim2)
    out = jax.block_until_ready(out)

    assert out.shape == (B, C_out, dim1, dim2), out.shape
    assert bool(jnp.isfinite(out).all())
    print("KERNEL_OK")
</pallas_src>

<mosaic_0001>
module attributes {stable_mosaic.version = 11 : i64} {
  func.func @_pointwise_op_kernel(%arg0: i32, %arg1: memref<8x256xf32, #tpu.memory_space<vmem>>, %arg2: memref<256x1024xf32, #tpu.memory_space<vmem>>, %arg3: memref<16x8xf32, #tpu.memory_space<vmem>>, %arg4: memref<16x1xf32, #tpu.memory_space<vmem>>, %arg5: memref<16x1024xf32, #tpu.memory_space<vmem>>) attributes {dimension_semantics = [#tpu.dimension_semantics<arbitrary>], iteration_bounds = array<i64: 1>, scalar_prefetch = 0 : i64, scratch_operands = 0 : i64, tpu.core_type = #tpu.core_type<tc>, window_params = [{pipeline_mode = #tpu.pipeline_mode<synchronous>, transform_indices = @transform_0, window_bounds = array<i64: 8, 256>}, {pipeline_mode = #tpu.pipeline_mode<synchronous>, transform_indices = @transform_1, window_bounds = array<i64: 256, 1024>}, {pipeline_mode = #tpu.pipeline_mode<synchronous>, transform_indices = @transform_2, window_bounds = array<i64: 16, 8>}, {pipeline_mode = #tpu.pipeline_mode<synchronous>, transform_indices = @transform_3, window_bounds = array<i64: 16, 1>}, {pipeline_mode = #tpu.pipeline_mode<synchronous>, transform_indices = @transform_4, window_bounds = array<i64: 16, 1024>}]} {
    %c0 = arith.constant 0 : index
    %c0_0 = arith.constant 0 : index
    %0 = vector.load %arg1[%c0, %c0_0] : memref<8x256xf32, #tpu.memory_space<vmem>>, vector<8x256xf32>
    %c0_1 = arith.constant 0 : index
    %c0_2 = arith.constant 0 : index
    %1 = vector.load %arg2[%c0_1, %c0_2] : memref<256x1024xf32, #tpu.memory_space<vmem>>, vector<256x1024xf32>
    %cst = arith.constant dense<0.000000e+00> : vector<8x1024xf32>
    %2 = tpu.matmul %0, %1, %cst {dimension_numbers = #tpu.dot_dimension_numbers<[1], [0], [0], [1], [0, 0, 1, 1], [], []>} : vector<8x256xf32>, vector<256x1024xf32>, vector<8x1024xf32> -> vector<8x1024xf32>
    %c0_3 = arith.constant 0 : index
    %c0_4 = arith.constant 0 : index
    %3 = vector.load %arg3[%c0_3, %c0_4] : memref<16x8xf32, #tpu.memory_space<vmem>>, vector<16x8xf32>
    %cst_5 = arith.constant dense<0.000000e+00> : vector<16x1024xf32>
    %4 = tpu.matmul %3, %2, %cst_5 {dimension_numbers = #tpu.dot_dimension_numbers<[1], [0], [0], [1], [0, 0, 1, 1], [], []>} : vector<16x8xf32>, vector<8x1024xf32>, vector<16x1024xf32> -> vector<16x1024xf32>
    %c0_6 = arith.constant 0 : index
    %c0_7 = arith.constant 0 : index
    %5 = vector.load %arg4[%c0_6, %c0_7] : memref<16x1xf32, #tpu.memory_space<vmem>>, vector<16x1xf32>
    %6 = vector.broadcast %5 : vector<16x1xf32> to vector<16x1024xf32>
    %7 = arith.addf %4, %6 : vector<16x1024xf32>
    %c0_8 = arith.constant 0 : index
    %c0_9 = arith.constant 0 : index
    %8 = vector.load %arg5[%c0_8, %c0_9] : memref<16x1024xf32, #tpu.memory_space<vmem>>, vector<16x1024xf32>
    tpu.vector_store %arg5[%c0_8, %c0_9], %7 {strides = array<i32>} : memref<16x1024xf32, #tpu.memory_space<vmem>>, vector<16x1024xf32>,
    return
  }
  func.func @transform_0(%arg0: i32) -> (i32, i32) {
    %c0_i32 = arith.constant 0 : i32
    %c0_i32_0 = arith.constant 0 : i32
    %c0_i32_1 = arith.constant 0 : i32
    return %c0_i32, %c0_i32_0 : i32, i32
  }
  func.func @transform_1(%arg0: i32) -> (i32, i32) {
    %c0_i32 = arith.constant 0 : i32
    %c0_i32_0 = arith.constant 0 : i32
    %c0_i32_1 = arith.constant 0 : i32
    return %c0_i32, %c0_i32_0 : i32, i32
  }
  func.func @transform_2(%arg0: i32) -> (i32, i32) {
    %c0_i32 = arith.constant 0 : i32
    %c0_i32_0 = arith.constant 0 : i32
    %c0_i32_1 = arith.constant 0 : i32
    return %c0_i32, %c0_i32_0 : i32, i32
  }
  func.func @transform_3(%arg0: i32) -> (i32, i32) {
    %c0_i32 = arith.constant 0 : i32
    %c0_i32_0 = arith.constant 0 : i32
    %c0_i32_1 = arith.constant 0 : i32
    return %c0_i32, %c0_i32_0 : i32, i32
  }
  func.func @transform_4(%arg0: i32) -> (i32, i32) {
    %c0_i32 = arith.constant 0 : i32
    %c0_i32_0 = arith.constant 0 : i32
    %c0_i32_1 = arith.constant 0 : i32
    return %c0_i32, %c0_i32_0 : i32, i32
  }
}

</mosaic_0001>

<llo_original>
// kernel: tpu_custom_call.1
$region0: #{tpu_custom_call.1}
  #allocation0 [shape = 'u32[]', space=smem, size = 0x4, offset = 0x4, fixed_abs, tag = 'smem constant byte address 0x4 - core index']
  #allocation1 [shape = 'u32[144,128]{1,0:T(1,128)}', space=vmem, size = 0x12000, scoped, tag = 'internal scratch']
  %s0 = inlined_call_operand.vmem [shape: f32[8,256], index: 0, kind: input, shape index: {}]
  %s1 = inlined_call_operand.hbm [shape: f32[256,1024], index: 1, kind: input, shape index: {}]
  %s2 = inlined_call_operand.vmem [shape: f32[16,8], index: 2, kind: input, shape index: {}]
  %s3 = inlined_call_operand.vmem [shape: f32[16,1], index: 3, kind: input, shape index: {}]
  %s4 = inlined_call_operand.hbm [shape: f32[16,1024], index: 4, kind: output, shape index: {}]
  %s5 = sld [smem:[#allocation0]]
  $region30: #{tpu_custom_call.1} parent=0
    _
  %s7 = ssub.s32 1, %s5
  %s8 = scalar_select 0, %s7, %s5
  $region1: #{tpu_custom_call.1} parent=0
    #allocation2 [shape = 'u8[1048576]{0}', space=vmem, size = 0x100000, scoped, tag = 'input window, operand 1, single buffered']
    #allocation3 [shape = 's32[1]{0}', space=sflag, size = 0x4, scoped, tag = 'scoped memory for tpu_custom_call.1']
    #allocation4 [shape = 's32[1]{0}', space=sflag, size = 0x4, scoped, tag = 'scoped memory for tpu_custom_call.1']
    #allocation5 [shape = 'u8[65536]{0}', space=vmem, size = 0x10000, scoped, tag = 'output window, operand 0, single buffered']
    %9 = vsyncpa [#allocation3], 0
    %10 = vsyncpa [#allocation4], 0
    // Predicated region
    $region2: #{tpu_custom_call.1} parent=1 // pred_check
      _
    $region3: #{tpu_custom_call.1} parent=1 // pred_check_branch
      %12 = sbr.rel (0) target = $region5
    $region4: #{tpu_custom_call.1} parent=1 // pred_region
      _
    $region5: #{tpu_custom_call.1} parent=1 // pred_fallthru
      _
    // Predicated region
    $region6: #{tpu_custom_call.1} parent=1 // pred_check
      _
    $region7: #{tpu_custom_call.1} parent=1 // pred_check_branch
      %14 = sbr.rel (0) target = $region9
    $region8: #{tpu_custom_call.1} parent=1 // pred_region
      %s16 = ssub.s32 32768, 32768
      %17 = vsyncadd [#allocation3], %s16
      %s18 = sshll.u32 [#allocation2], 4
      %s19 = int_to_ptr.vmem [resolvable:$true] %s18
      %24 = dma.hbm_to_vmem [thread:$0]  %s1, 32768, %s19, [#allocation3], 1024, 1024, 64
    $region9: #{tpu_custom_call.1} parent=1 // pred_fallthru
      _
    // Predicated region
    $region10: #{tpu_custom_call.1} parent=1 // pred_check
      _
    $region11: #{tpu_custom_call.1} parent=1 // pred_check_branch
      %26 = sbr.rel (0) target = $region13
    $region12: #{tpu_custom_call.1} parent=1 // pred_region
      _
    $region13: #{tpu_custom_call.1} parent=1 // pred_fallthru
      _
    // Predicated region
    $region14: #{tpu_custom_call.1} parent=1 // pred_check
      _
    $region15: #{tpu_custom_call.1} parent=1 // pred_check_branch
      %28 = sbr.rel (0) target = $region17
    $region16: #{tpu_custom_call.1} parent=1 // pred_region
      _
    $region17: #{tpu_custom_call.1} parent=1 // pred_fallthru
      _
    // Predicated region
    $region18: #{tpu_custom_call.1} parent=1 // pred_check
      _
    $region19: #{tpu_custom_call.1} parent=1 // pred_check_branch
      %30 = sbr.rel (0) target = $region21
    $region20: #{tpu_custom_call.1} parent=1 // pred_region
      %31 = dma.done [#allocation3], 32768
    $region21: #{tpu_custom_call.1} parent=1 // pred_fallthru
      _
    %v32 = vld [vmem:[%s0] sm:$0xff]
    %v33 = vld [vmem:[%s0 + $0x8] sm:$0xff]
    %v34 = vld [vmem:[#allocation2] sm:$0xff]
    %v35 = vld [vmem:[#allocation2 + $0x8] sm:$0xff]
    %v36 = vld [vmem:[#allocation2 + $0x10] sm:$0xff]
    %v37 = vld [vmem:[#allocation2 + $0x18] sm:$0xff]
    %v38 = vld [vmem:[#allocation2 + $0x20] sm:$0xff]
    %v39 = vld [vmem:[#allocation2 + $0x28] sm:$0xff]
    %v40 = vld [vmem:[#allocation2 + $0x30] sm:$0xff]
    %v41 = vld [vmem:[#allocation2 + $0x38] sm:$0xff]
    %v42 = vld [vmem:[#allocation2 + $0x40] sm:$0xff]
    %v43 = vld [vmem:[#allocation2 + $0x48] sm:$0xff]
    %v44 = vld [vmem:[#allocation2 + $0x50] sm:$0xff]
    %v45 = vld [vmem:[#allocation2 + $0x58] sm:$0xff]
    %v46 = vld [vmem:[#allocation2 + $0x60] sm:$0xff]
    %v47 = vld [vmem:[#allocation2 + $0x68] sm:$0xff]
    %v48 = vld [vmem:[#allocation2 + $0x70] sm:$0xff]
    %v49 = vld [vmem:[#allocation2 + $0x78] sm:$0xff]
    %v50 = vld [vmem:[#allocation2 + $0x80] sm:$0xff]
    %v51 = vld [vmem:[#allocation2 + $0x88] sm:$0xff]
    %v52 = vld [vmem:[#allocation2 + $0x90] sm:$0xff]
    %v53 = vld [vmem:[#allocation2 + $0x98] sm:$0xff]
    %v54 = vld [vmem:[#allocation2 + $0xa0] sm:$0xff]
    %v55 = vld [vmem:[#allocation2 + $0xa8] sm:$0xff]
    %v56 = vld [vmem:[#allocation2 + $0xb0] sm:$0xff]
    %v57 = vld [vmem:[#allocation2 + $0xb8] sm:$0xff]
    %v58 = vld [vmem:[#allocation2 + $0xc0] sm:$0xff]
    %v59 = vld [vmem:[#allocation2 + $0xc8] sm:$0xff]
    %v60 = vld [vmem:[#allocation2 + $0xd0] sm:$0xff]
    %v61 = vld [vmem:[#allocation2 + $0xd8] sm:$0xff]
    %v62 = vld [vmem:[#allocation2 + $0xe0] sm:$0xff]
    %v63 = vld [vmem:[#allocation2 + $0xe8] sm:$0xff]
    %v64 = vld [vmem:[#allocation2 + $0xf0] sm:$0xff]
    %v65 = vld [vmem:[#allocation2 + $0xf8] sm:$0xff]
    %v66 = vld [vmem:[#allocation2 + $0x100] sm:$0xff]
    %v67 = vld [vmem:[#allocation2 + $0x108] sm:$0xff]
    %v68 = vld [vmem:[#allocation2 + $0x110] sm:$0xff]
    %v69 = vld [vmem:[#allocation2 + $0x118] sm:$0xff]
    %v70 = vld [vmem:[#allocation2 + $0x120] sm:$0xff]
    %v71 = vld [vmem:[#allocation2 + $0x128] sm:$0xff]
    %v72 = vld [vmem:[#allocation2 + $0x130] sm:$0xff]
    %v73 = vld [vmem:[#allocation2 + $0x138] sm:$0xff]
    %v74 = vld [vmem:[#allocation2 + $0x140] sm:$0xff]
    %v75 = vld [vmem:[#allocation2 + $0x148] sm:$0xff]
    %v76 = vld [vmem:[#allocation2 + $0x150] sm:$0xff]
    %v77 = vld [vmem:[#allocation2 + $0x158] sm:$0xff]
    %v78 = vld [vmem:[#allocation2 + $0x160] sm:$0xff]
    %v79 = vld [vmem:[#allocation2 + $0x168] sm:$0xff]
    %v80 = vld [vmem:[#allocation2 + $0x170] sm:$0xff]
    %v81 = vld [vmem:[#allocation2 + $0x178] sm:$0xff]
    %v82 = vld [vmem:[#allocation2 + $0x180] sm:$0xff]
    %v83 = vld [vmem:[#allocation2 + $0x188] sm:$0xff]
    %v84 = vld [vmem:[#allocation2 + $0x190] sm:$0xff]
    %v85 = vld [vmem:[#allocation2 + $0x198] sm:$0xff]
    %v86 = vld [vmem:[#allocation2 + $0x1a0] sm:$0xff]
    %v87 = vld [vmem:[#allocation2 + $0x1a8] sm:$0xff]
    %v88 = vld [vmem:[#allocation2 + $0x1b0] sm:$0xff]
    %v89 = vld [vmem:[#allocation2 + $0x1b8] sm:$0xff]
    %v90 = vld [vmem:[#allocation2 + $0x1c0] sm:$0xff]
    %v91 = vld [vmem:[#allocation2 + $0x1c8] sm:$0xff]
    %v92 = vld [vmem:[#allocation2 + $0x1d0] sm:$0xff]
    %v93 = vld [vmem:[#allocation2 + $0x1d8] sm:$0xff]
    %v94 = vld [vmem:[#allocation2 + $0x1e0] sm:$0xff]
    %v95 = vld [vmem:[#allocation2 + $0x1e8] sm:$0xff]
    %v96 = vld [vmem:[#allocation2 + $0x1f0] sm:$0xff]
    %v97 = vld [vmem:[#allocation2 + $0x1f8] sm:$0xff]
    %v98 = vld [vmem:[#allocation2 + $0x200] sm:$0xff]
    %v99 = vld [vmem:[#allocation2 + $0x208] sm:$0xff]
    %v100 = vld [vmem:[#allocation2 + $0x210] sm:$0xff]
    %v101 = vld [vmem:[#allocation2 + $0x218] sm:$0xff]
    %v102 = vld [vmem:[#allocation2 + $0x220] sm:$0xff]
    %v103 = vld [vmem:[#allocation2 + $0x228] sm:$0xff]
    %v104 = vld [vmem:[#allocation2 + $0x230] sm:$0xff]
    %v105 = vld [vmem:[#allocation2 + $0x238] sm:$0xff]
    %v106 = vld [vmem:[#allocation2 + $0x240] sm:$0xff]
    %v107 = vld [vmem:[#allocation2 + $0x248] sm:$0xff]
    %v108 = vld [vmem:[#allocation2 + $0x250] sm:$0xff]
    %v109 = vld [vmem:[#allocation2 + $0x258] sm:$0xff]
    %v110 = vld [vmem:[#allocation2 + $0x260] sm:$0xff]
    %v111 = vld [vmem:[#allocation2 + $0x268] sm:$0xff]
    %v112 = vld [vmem:[#allocation2 + $0x270] sm:$0xff]
    %v113 = vld [vmem:[#allocation2 + $0x278] sm:$0xff]
    %v114 = vld [vmem:[#allocation2 + $0x280] sm:$0xff]
    %v115 = vld [vmem:[#allocation2 + $0x288] sm:$0xff]
    %v116 = vld [vmem:[#allocation2 + $0x290] sm:$0xff]
    %v117 = vld [vmem:[#allocation2 + $0x298] sm:$0xff]
    %v118 = vld [vmem:[#allocation2 + $0x2a0] sm:$0xff]
    %v119 = vld [vmem:[#allocation2 + $0x2a8] sm:$0xff]
    %v120 = vld [vmem:[#allocation2 + $0x2b0] sm:$0xff]
    %v121 = vld [vmem:[#allocation2 + $0x2b8] sm:$0xff]
    %v122 = vld [vmem:[#allocation2 + $0x2c0] sm:$0xff]
    %v123 = vld [vmem:[#allocation2 + $0x2c8] sm:$0xff]
    %v124 = vld [vmem:[#allocation2 + $0x2d0] sm:$0xff]
    %v125 = vld [vmem:[#allocation2 + $0x2d8] sm:$0xff]
    %v126 = vld [vmem:[#allocation2 + $0x2e0] sm:$0xff]
    %v127 = vld [vmem:[#allocation2 + $0x2e8] sm:$0xff]
    %v128 = vld [vmem:[#allocation2 + $0x2f0] sm:$0xff]
    %v129 = vld [vmem:[#allocation2 + $0x2f8] sm:$0xff]
    %v130 = vld [vmem:[#allocation2 + $0x300] sm:$0xff]
    %v131 = vld [vmem:[#allocation2 + $0x308] sm:$0xff]
    %v132 = vld [vmem:[#allocation2 + $0x310] sm:$0xff]
    %v133 = vld [vmem:[#allocation2 + $0x318] sm:$0xff]
    %v134 = vld [vmem:[#allocation2 + $0x320] sm:$0xff]
    %v135 = vld [vmem:[#allocation2 + $0x328] sm:$0xff]
    %v136 = vld [vmem:[#allocation2 + $0x330] sm:$0xff]
    %v137 = vld [vmem:[#allocation2 + $0x338] sm:$0xff]
    %v138 = vld [vmem:[#allocation2 + $0x340] sm:$0xff]
    %v139 = vld [vmem:[#allocation2 + $0x348] sm:$0xff]
    %v140 = vld [vmem:[#allocation2 + $0x350] sm:$0xff]
    %v141 = vld [vmem:[#allocation2 + $0x358] sm:$0xff]
    %v142 = vld [vmem:[#allocation2 + $0x360] sm:$0xff]
    %v143 = vld [vmem:[#allocation2 + $0x368] sm:$0xff]
    %v144 = vld [vmem:[#allocation2 + $0x370] sm:$0xff]
    %v145 = vld [vmem:[#allocation2 + $0x378] sm:$0xff]
    %v146 = vld [vmem:[#allocation2 + $0x380] sm:$0xff]
    %v147 = vld [vmem:[#allocation2 + $0x388] sm:$0xff]
    %v148 = vld [vmem:[#allocation2 + $0x390] sm:$0xff]
    %v149 = vld [vmem:[#allocation2 + $0x398] sm:$0xff]
    %v150 = vld [vmem:[#allocation2 + $0x3a0] sm:$0xff]
    %v151 = vld [vmem:[#allocation2 + $0x3a8] sm:$0xff]
    %v152 = vld [vmem:[#allocation2 + $0x3b0] sm:$0xff]
    %v153 = vld [vmem:[#allocation2 + $0x3b8] sm:$0xff]
    %v154 = vld [vmem:[#allocation2 + $0x3c0] sm:$0xff]
    %v155 = vld [vmem:[#allocation2 + $0x3c8] sm:$0xff]
    %v156 = vld [vmem:[#allocation2 + $0x3d0] sm:$0xff]
    %v157 = vld [vmem:[#allocation2 + $0x3d8] sm:$0xff]
    %v158 = vld [vmem:[#allocation2 + $0x3e0] sm:$0xff]
    %v159 = vld [vmem:[#allocation2 + $0x3e8] sm:$0xff]
    %v160 = vld [vmem:[#allocation2 + $0x3f0] sm:$0xff]
    %v161 = vld [vmem:[#allocation2 + $0x3f8] sm:$0xff]
    %v162 = vld [vmem:[#allocation2 + $0x400] sm:$0xff]
    %v163 = vld [vmem:[#allocation2 + $0x408] sm:$0xff]
    %v164 = vld [vmem:[#allocation2 + $0x410] sm:$0xff]
    %v165 = vld [vmem:[#allocation2 + $0x418] sm:$0xff]
    %v166 = vld [vmem:[#allocation2 + $0x420] sm:$0xff]
    %v167 = vld [vmem:[#allocation2 + $0x428] sm:$0xff]
    %v168 = vld [vmem:[#allocation2 + $0x430] sm:$0xff]
    %v169 = vld [vmem:[#allocation2 + $0x438] sm:$0xff]
    %v170 = vld [vmem:[#allocation2 + $0x440] sm:$0xff]
    %v171 = vld [vmem:[#allocation2 + $0x448] sm:$0xff]
    %v172 = vld [vmem:[#allocation2 + $0x450] sm:$0xff]
    %v173 = vld [vmem:[#allocation2 + $0x458] sm:$0xff]
    %v174 = vld [vmem:[#allocation2 + $0x460] sm:$0xff]
    %v175 = vld [vmem:[#allocation2 + $0x468] sm:$0xff]
    %v176 = vld [vmem:[#allocation2 + $0x470] sm:$0xff]
    %v177 = vld [vmem:[#allocation2 + $0x478] sm:$0xff]
    %v178 = vld [vmem:[#allocation2 + $0x480] sm:$0xff]
    %v179 = vld [vmem:[#allocation2 + $0x488] sm:$0xff]
    %v180 = vld [vmem:[#allocation2 + $0x490] sm:$0xff]
    %v181 = vld [vmem:[#allocation2 + $0x498] sm:$0xff]
    %v182 = vld [vmem:[#allocation2 + $0x4a0] sm:$0xff]
    %v183 = vld [vmem:[#allocation2 + $0x4a8] sm:$0xff]
    %v184 = vld [vmem:[#allocation2 + $0x4b0] sm:$0xff]
    %v185 = vld [vmem:[#allocation2 + $0x4b8] sm:$0xff]
    %v186 = vld [vmem:[#allocation2 + $0x4c0] sm:$0xff]
    %v187 = vld [vmem:[#allocation2 + $0x4c8] sm:$0xff]
    %v188 = vld [vmem:[#allocation2 + $0x4d0] sm:$0xff]
    %v189 = vld [vmem:[#allocation2 + $0x4d8] sm:$0xff]
    %v190 = vld [vmem:[#allocation2 + $0x4e0] sm:$0xff]
    %v191 = vld [vmem:[#allocation2 + $0x4e8] sm:$0xff]
    %v192 = vld [vmem:[#allocation2 + $0x4f0] sm:$0xff]
    %v193 = vld [vmem:[#allocation2 + $0x4f8] sm:$0xff]
    %v194 = vld [vmem:[#allocation2 + $0x500] sm:$0xff]
    %v195 = vld [vmem:[#allocation2 + $0x508] sm:$0xff]
    %v196 = vld [vmem:[#allocation2 + $0x510] sm:$0xff]
    %v197 = vld [vmem:[#allocation2 + $0x518] sm:$0xff]
    %v198 = vld [vmem:[#allocation2 + $0x520] sm:$0xff]
    %v199 = vld [vmem:[#allocation2 + $0x528] sm:$0xff]
    %v200 = vld [vmem:[#allocation2 + $0x530] sm:$0xff]
    %v201 = vld [vmem:[#allocation2 + $0x538] sm:$0xff]
    %v202 = vld [vmem:[#allocation2 + $0x540] sm:$0xff]
    %v203 = vld [vmem:[#allocation2 + $0x548] sm:$0xff]
    %v204 = vld [vmem:[#allocation2 + $0x550] sm:$0xff]
    %v205 = vld [vmem:[#allocation2 + $0x558] sm:$0xff]
    %v206 = vld [vmem:[#allocation2 + $0x560] sm:$0xff]
    %v207 = vld [vmem:[#allocation2 + $0x568] sm:$0xff]
    %v208 = vld [vmem:[#allocation2 + $0x570] sm:$0xff]
    %v209 = vld [vmem:[#allocation2 + $0x578] sm:$0xff]
    %v210 = vld [vmem:[#allocation2 + $0x580] sm:$0xff]
    %v211 = vld [vmem:[#allocation2 + $0x588] sm:$0xff]
    %v212 = vld [vmem:[#allocation2 + $0x590] sm:$0xff]
    %v213 = vld [vmem:[#allocation2 + $0x598] sm:$0xff]
    %v214 = vld [vmem:[#allocation2 + $0x5a0] sm:$0xff]
    %v215 = vld [vmem:[#allocation2 + $0x5a8] sm:$0xff]
    %v216 = vld [vmem:[#allocation2 + $0x5b0] sm:$0xff]
    %v217 = vld [vmem:[#allocation2 + $0x5b8] sm:$0xff]
    %v218 = vld [vmem:[#allocation2 + $0x5c0] sm:$0xff]
    %v219 = vld [vmem:[#allocation2 + $0x5c8] sm:$0xff]
    %v220 = vld [vmem:[#allocation2 + $0x5d0] sm:$0xff]
    %v221 = vld [vmem:[#allocation2 + $0x5d8] sm:$0xff]
    %v222 = vld [vmem:[#allocation2 + $0x5e0] sm:$0xff]
    %v223 = vld [vmem:[#allocation2 + $0x5e8] sm:$0xff]
    %v224 = vld [vmem:[#allocation2 + $0x5f0] sm:$0xff]
    %v225 = vld [vmem:[#allocation2 + $0x5f8] sm:$0xff]
    %v226 = vld [vmem:[#allocation2 + $0x600] sm:$0xff]
    %v227 = vld [vmem:[#allocation2 + $0x608] sm:$0xff]
    %v228 = vld [vmem:[#allocation2 + $0x610] sm:$0xff]
    %v229 = vld [vmem:[#allocation2 + $0x618] sm:$0xff]
    %v230 = vld [vmem:[#allocation2 + $0x620] sm:$0xff]
    %v231 = vld [vmem:[#allocation2 + $0x628] sm:$0xff]
    %v232 = vld [vmem:[#allocation2 + $0x630] sm:$0xff]
    %v233 = vld [vmem:[#allocation2 + $0x638] sm:$0xff]
    %v234 = vld [vmem:[#allocation2 + $0x640] sm:$0xff]
    %v235 = vld [vmem:[#allocation2 + $0x648] sm:$0xff]
    %v236 = vld [vmem:[#allocation2 + $0x650] sm:$0xff]
    %v237 = vld [vmem:[#allocation2 + $0x658] sm:$0xff]
    %v238 = vld [vmem:[#allocation2 + $0x660] sm:$0xff]
    %v239 = vld [vmem:[#allocation2 + $0x668] sm:$0xff]
    %v240 = vld [vmem:[#allocation2 + $0x670] sm:$0xff]
    %v241 = vld [vmem:[#allocation2 + $0x678] sm:$0xff]
    %v242 = vld [vmem:[#allocation2 + $0x680] sm:$0xff]
    %v243 = vld [vmem:[#allocation2 + $0x688] sm:$0xff]
    %v244 = vld [vmem:[#allocation2 + $0x690] sm:$0xff]
    %v245 = vld [vmem:[#allocation2 + $0x698] sm:$0xff]
    %v246 = vld [vmem:[#allocation2 + $0x6a0] sm:$0xff]
    %v247 = vld [vmem:[#allocation2 + $0x6a8] sm:$0xff]
    %v248 = vld [vmem:[#allocation2 + $0x6b0] sm:$0xff]
    %v249 = vld [vmem:[#allocation2 + $0x6b8] sm:$0xff]
    %v250 = vld [vmem:[#allocation2 + $0x6c0] sm:$0xff]
    %v251 = vld [vmem:[#allocation2 + $0x6c8] sm:$0xff]
    %v252 = vld [vmem:[#allocation2 + $0x6d0] sm:$0xff]
    %v253 = vld [vmem:[#allocation2 + $0x6d8] sm:$0xff]
    %v254 = vld [vmem:[#allocation2 + $0x6e0] sm:$0xff]
    %v255 = vld [vmem:[#allocation2 + $0x6e8] sm:$0xff]
    %v256 = vld [vmem:[#allocation2 + $0x6f0] sm:$0xff]
    %v257 = vld [vmem:[#allocation2 + $0x6f8] sm:$0xff]
    %v258 = vld [vmem:[#allocation2 + $0x700] sm:$0xff]
    %v259 = vld [vmem:[#allocation2 + $0x708] sm:$0xff]
    %v260 = vld [vmem:[#allocation2 + $0x710] sm:$0xff]
    %v261 = vld [vmem:[#allocation2 + $0x718] sm:$0xff]
    %v262 = vld [vmem:[#allocation2 + $0x720] sm:$0xff]
    %v263 = vld [vmem:[#allocation2 + $0x728] sm:$0xff]
    %v264 = vld [vmem:[#allocation2 + $0x730] sm:$0xff]
    %v265 = vld [vmem:[#allocation2 + $0x738] sm:$0xff]
    %v266 = vld [vmem:[#allocation2 + $0x740] sm:$0xff]
    %v267 = vld [vmem:[#allocation2 + $0x748] sm:$0xff]
    %v268 = vld [vmem:[#allocation2 + $0x750] sm:$0xff]
    %v269 = vld [vmem:[#allocation2 + $0x758] sm:$0xff]
    %v270 = vld [vmem:[#allocation2 + $0x760] sm:$0xff]
    %v271 = vld [vmem:[#allocation2 + $0x768] sm:$0xff]
    %v272 = vld [vmem:[#allocation2 + $0x770] sm:$0xff]
    %v273 = vld [vmem:[#allocation2 + $0x778] sm:$0xff]
    %v274 = vld [vmem:[#allocation2 + $0x780] sm:$0xff]
    %v275 = vld [vmem:[#allocation2 + $0x788] sm:$0xff]
    %v276 = vld [vmem:[#allocation2 + $0x790] sm:$0xff]
    %v277 = vld [vmem:[#allocation2 + $0x798] sm:$0xff]
    %v278 = vld [vmem:[#allocation2 + $0x7a0] sm:$0xff]
    %v279 = vld [vmem:[#allocation2 + $0x7a8] sm:$0xff]
    %v280 = vld [vmem:[#allocation2 + $0x7b0] sm:$0xff]
    %v281 = vld [vmem:[#allocation2 + $0x7b8] sm:$0xff]
    %v282 = vld [vmem:[#allocation2 + $0x7c0] sm:$0xff]
    %v283 = vld [vmem:[#allocation2 + $0x7c8] sm:$0xff]
    %v284 = vld [vmem:[#allocation2 + $0x7d0] sm:$0xff]
    %v285 = vld [vmem:[#allocation2 + $0x7d8] sm:$0xff]
    %v286 = vld [vmem:[#allocation2 + $0x7e0] sm:$0xff]
    %v287 = vld [vmem:[#allocation2 + $0x7e8] sm:$0xff]
    %v288 = vld [vmem:[#allocation2 + $0x7f0] sm:$0xff]
    %v289 = vld [vmem:[#allocation2 + $0x7f8] sm:$0xff]
    %290 = vmatprep.subr.mxu0 %v35
    %291 = vmatpush1.msra.mxu0 %v34
    %292 = vmatprep.subr.mxu0 %v43
    %293 = vmatpush1.msra.mxu0 %v42
    %294 = vmatprep.subr.mxu0 %v51
    %295 = vmatpush1.msra.mxu0 %v50
    %296 = vmatprep.subr.mxu0 %v59
    %297 = vmatpush1.msra.mxu0 %v58
    %298 = vmatprep.subr.mxu0 %v67
    %299 = vmatpush1.msra.mxu0 %v66
    %300 = vmatprep.subr.mxu0 %v75
    %301 = vmatpush1.msra.mxu0 %v74
    %302 = vmatprep.subr.mxu0 %v83
    %303 = vmatpush1.msra.mxu0 %v82
    %304 = vmatprep.subr.mxu0 %v91
    %305 = vmatpush1.msra.mxu0 %v90
    %306 = vmatprep.subr.mxu0 %v99
    %307 = vmatpush1.msra.mxu0 %v98
    %308 = vmatprep.subr.mxu0 %v107
    %309 = vmatpush1.msra.mxu0 %v106
    %310 = vmatprep.subr.mxu0 %v115
    %311 = vmatpush1.msra.mxu0 %v114
    %312 = vmatprep.subr.mxu0 %v123
    %313 = vmatpush1.msra.mxu0 %v122
    %314 = vmatprep.subr.mxu0 %v131
    %315 = vmatpush1.msra.mxu0 %v130
    %316 = vmatprep.subr.mxu0 %v139
    %317 = vmatpush1.msra.mxu0 %v138
    %318 = vmatprep.subr.mxu0 %v147
    %319 = vmatpush1.msra.mxu0 %v146
    %320 = vmatprep.subr.mxu0 %v155
    %321 = vmatpush1.msra.mxu0 %v154
    %322 = vmatprep.subr.mxu0 %v163
    %323 = vmatpush1.msra.mxu0 %v162
    %324 = vmatprep.subr.mxu0 %v171
    %325 = vmatpush1.msra.mxu0 %v170
    %326 = vmatprep.subr.mxu0 %v179
    %327 = vmatpush1.msra.mxu0 %v178
    %328 = vmatprep.subr.mxu0 %v187
    %329 = vmatpush1.msra.mxu0 %v186
    %330 = vmatprep.subr.mxu0 %v195
    %331 = vmatpush1.msra.mxu0 %v194
    %332 = vmatprep.subr.mxu0 %v203
    %333 = vmatpush1.msra.mxu0 %v202
    %334 = vmatprep.subr.mxu0 %v211
    %335 = vmatpush1.msra.mxu0 %v210
    %336 = vmatprep.subr.mxu0 %v219
    %337 = vmatpush1.msra.mxu0 %v218
    %338 = vmatprep.subr.mxu0 %v227
    %339 = vmatpush1.msra.mxu0 %v226
    %340 = vmatprep.subr.mxu0 %v235
    %341 = vmatpush1.msra.mxu0 %v234
    %342 = vmatprep.subr.mxu0 %v243
    %343 = vmatpush1.msra.mxu0 %v242
    %344 = vmatprep.subr.mxu0 %v251
    %345 = vmatpush1.msra.mxu0 %v250
    %346 = vmatprep.subr.mxu0 %v259
    %347 = vmatpush1.msra.mxu0 %v258
    %348 = vmatprep.subr.mxu0 %v267
    %349 = vmatpush1.msra.mxu0 %v266
    %350 = vmatprep.subr.mxu0 %v275
    %351 = vmatpush1.msra.mxu0 %v274
    %352 = vmatprep.subr.mxu0 %v283
    %353 = vmatpush1.msra.mxu0 %v282
    %354 = vmatprep.mubr.f32.mxu0 %v33
    %355 = vmatmul.mubr.f32.gmra.mrb[0].mxu0 %v32
    %v356 = vpop.f32.mrb[0].mxu0
    %v357 = vadd.f32 0.0, %v356
    %v358 = vpop.f32.mrb[0].mxu0
    %v359 = vadd.f32 0.0, %v358
    %360 = vdwg.mxu0
    %361 = vmatprep.subr.mxu0 %v37
    %362 = vmatpush1.msra.mxu0 %v36
    %363 = vmatprep.subr.mxu0 %v45
    %364 = vmatpush1.msra.mxu0 %v44
    %365 = vmatprep.subr.mxu0 %v53
    %366 = vmatpush1.msra.mxu0 %v52
    %367 = vmatprep.subr.mxu0 %v61
    %368 = vmatpush1.msra.mxu0 %v60
    %369 = vmatprep.subr.mxu0 %v69
    %370 = vmatpush1.msra.mxu0 %v68
    %371 = vmatprep.subr.mxu0 %v77
    %372 = vmatpush1.msra.mxu0 %v76
    %373 = vmatprep.subr.mxu0 %v85
    %374 = vmatpush1.msra.mxu0 %v84
    %375 = vmatprep.subr.mxu0 %v93
    %376 = vmatpush1.msra.mxu0 %v92
    %377 = vmatprep.subr.mxu0 %v101
    %378 = vmatpush1.msra.mxu0 %v100
    %379 = vmatprep.subr.mxu0 %v109
    %380 = vmatpush1.msra.mxu0 %v108
    %381 = vmatprep.subr.mxu0 %v117
    %382 = vmatpush1.msra.mxu0 %v116
    %383 = vmatprep.subr.mxu0 %v125
    %384 = vmatpush1.msra.mxu0 %v124
    %385 = vmatprep.subr.mxu0 %v133
    %386 = vmatpush1.msra.mxu0 %v132
    %387 = vmatprep.subr.mxu0 %v141
    %388 = vmatpush1.msra.mxu0 %v140
    %389 = vmatprep.subr.mxu0 %v149
    %390 = vmatpush1.msra.mxu0 %v148
    %391 = vmatprep.subr.mxu0 %v157
    %392 = vmatpush1.msra.mxu0 %v156
    %393 = vmatprep.subr.mxu0 %v165
    %394 = vmatpush1.msra.mxu0 %v164
    %395 = vmatprep.subr.mxu0 %v173
    %396 = vmatpush1.msra.mxu0 %v172
    %397 = vmatprep.subr.mxu0 %v181
    %398 = vmatpush1.msra.mxu0 %v180
    %399 = vmatprep.subr.mxu0 %v189
    %400 = vmatpush1.msra.mxu0 %v188
    %401 = vmatprep.subr.mxu0 %v197
    %402 = vmatpush1.msra.mxu0 %v196
    %403 = vmatprep.subr.mxu0 %v205
    %404 = vmatpush1.msra.mxu0 %v204
    %405 = vmatprep.subr.mxu0 %v213
    %406 = vmatpush1.msra.mxu0 %v212
    %407 = vmatprep.subr.mxu0 %v221
    %408 = vmatpush1.msra.mxu0 %v220
    %409 = vmatprep.subr.mxu0 %v229
    %410 = vmatpush1.msra.mxu0 %v228
    %411 = vmatprep.subr.mxu0 %v237
    %412 = vmatpush1.msra.mxu0 %v236
    %413 = vmatprep.subr.mxu0 %v245
    %414 = vmatpush1.msra.mxu0 %v244
    %415 = vmatprep.subr.mxu0 %v253
    %416 = vmatpush1.msra.mxu0 %v252
    %417 = vmatprep.subr.mxu0 %v261
    %418 = vmatpush1.msra.mxu0 %v260
    %419 = vmatprep.subr.mxu0 %v269
    %420 = vmatpush1.msra.mxu0 %v268
    %421 = vmatprep.subr.mxu0 %v277
    %422 = vmatpush1.msra.mxu0 %v276
    %423 = vmatprep.subr.mxu0 %v285
    %424 = vmatpush1.msra.mxu0 %v284
    %425 = vmatprep.mubr.f32.mxu0 %v33
    %426 = vmatmul.mubr.f32.gmra.mrb[0].mxu0 %v32
    %v427 = vpop.f32.mrb[0].mxu0
    %v428 = vadd.f32 0.0, %v427
    %v429 = vpop.f32.mrb[0].mxu0
    %v430 = vadd.f32 0.0, %v429
    %431 = vdwg.mxu0
    %432 = vmatprep.subr.mxu0 %v39
    %433 = vmatpush1.msra.mxu0 %v38
    %434 = vmatprep.subr.mxu0 %v47
    %435 = vmatpush1.msra.mxu0 %v46
    %436 = vmatprep.subr.mxu0 %v55
    %437 = vmatpush1.msra.mxu0 %v54
    %438 = vmatprep.subr.mxu0 %v63
    %439 = vmatpush1.msra.mxu0 %v62
    %440 = vmatprep.subr.mxu0 %v71
    %441 = vmatpush1.msra.mxu0 %v70
    %442 = vmatprep.subr.mxu0 %v79
    %443 = vmatpush1.msra.mxu0 %v78
    %444 = vmatprep.subr.mxu0 %v87
    %445 = vmatpush1.msra.mxu0 %v86
    %446 = vmatprep.subr.mxu0 %v95
    %447 = vmatpush1.msra.mxu0 %v94
    %448 = vmatprep.subr.mxu0 %v103
    %449 = vmatpush1.msra.mxu0 %v102
    %450 = vmatprep.subr.mxu0 %v111
    %451 = vmatpush1.msra.mxu0 %v110
    %452 = vmatprep.subr.mxu0 %v119
    %453 = vmatpush1.msra.mxu0 %v118
    %454 = vmatprep.subr.mxu0 %v127
    %455 = vmatpush1.msra.mxu0 %v126
    %456 = vmatprep.subr.mxu0 %v135
    %457 = vmatpush1.msra.mxu0 %v134
    %458 = vmatprep.subr.mxu0 %v143
    %459 = vmatpush1.msra.mxu0 %v142
    %460 = vmatprep.subr.mxu0 %v151
    %461 = vmatpush1.msra.mxu0 %v150
    %462 = vmatprep.subr.mxu0 %v159
    %463 = vmatpush1.msra.mxu0 %v158
    %464 = vmatprep.subr.mxu0 %v167
    %465 = vmatpush1.msra.mxu0 %v166
    %466 = vmatprep.subr.mxu0 %v175
    %467 = vmatpush1.msra.mxu0 %v174
    %468 = vmatprep.subr.mxu0 %v183
    %469 = vmatpush1.msra.mxu0 %v182
    %470 = vmatprep.subr.mxu0 %v191
    %471 = vmatpush1.msra.mxu0 %v190
    %472 = vmatprep.subr.mxu0 %v199
    %473 = vmatpush1.msra.mxu0 %v198
    %474 = vmatprep.subr.mxu0 %v207
    %475 = vmatpush1.msra.mxu0 %v206
    %476 = vmatprep.subr.mxu0 %v215
    %477 = vmatpush1.msra.mxu0 %v214
    %478 = vmatprep.subr.mxu0 %v223
    %479 = vmatpush1.msra.mxu0 %v222
    %480 = vmatprep.subr.mxu0 %v231
    %481 = vmatpush1.msra.mxu0 %v230
    %482 = vmatprep.subr.mxu0 %v239
    %483 = vmatpush1.msra.mxu0 %v238
    %484 = vmatprep.subr.mxu0 %v247
    %485 = vmatpush1.msra.mxu0 %v246
    %486 = vmatprep.subr.mxu0 %v255
    %487 = vmatpush1.msra.mxu0 %v254
    %488 = vmatprep.subr.mxu0 %v263
    %489 = vmatpush1.msra.mxu0 %v262
    %490 = vmatprep.subr.mxu0 %v271
    %491 = vmatpush1.msra.mxu0 %v270
    %492 = vmatprep.subr.mxu0 %v279
    %493 = vmatpush1.msra.mxu0 %v278
    %494 = vmatprep.subr.mxu0 %v287
    %495 = vmatpush1.msra.mxu0 %v286
    %496 = vmatprep.mubr.f32.mxu0 %v33
    %497 = vmatmul.mubr.f32.gmra.mrb[0].mxu0 %v32
    %v498 = vpop.f32.mrb[0].mxu0
    %v499 = vadd.f32 0.0, %v498
    %v500 = vpop.f32.mrb[0].mxu0
    %v501 = vadd.f32 0.0, %v500
    %502 = vdwg.mxu0
    %503 = vmatprep.subr.mxu0 %v41
    %504 = vmatpush1.msra.mxu0 %v40
    %505 = vmatprep.subr.mxu0 %v49
    %506 = vmatpush1.msra.mxu0 %v48
    %507 = vmatprep.subr.mxu0 %v57
    %508 = vmatpush1.msra.mxu0 %v56
    %509 = vmatprep.subr.mxu0 %v65
    %510 = vmatpush1.msra.mxu0 %v64
    %511 = vmatprep.subr.mxu0 %v73
    %512 = vmatpush1.msra.mxu0 %v72
    %513 = vmatprep.subr.mxu0 %v81
    %514 = vmatpush1.msra.mxu0 %v80
    %515 = vmatprep.subr.mxu0 %v89
    %516 = vmatpush1.msra.mxu0 %v88
    %517 = vmatprep.subr.mxu0 %v97
    %518 = vmatpush1.msra.mxu0 %v96
    %519 = vmatprep.subr.mxu0 %v105
    %520 = vmatpush1.msra.mxu0 %v104
    %521 = vmatprep.subr.mxu0 %v113
    %522 = vmatpush1.msra.mxu0 %v112
    %523 = vmatprep.subr.mxu0 %v121
    %524 = vmatpush1.msra.mxu0 %v120
    %525 = vmatprep.subr.mxu0 %v129
    %526 = vmatpush1.msra.mxu0 %v128
    %527 = vmatprep.subr.mxu0 %v137
    %528 = vmatpush1.msra.mxu0 %v136
    %529 = vmatprep.subr.mxu0 %v145
    %530 = vmatpush1.msra.mxu0 %v144
    %531 = vmatprep.subr.mxu0 %v153
    %532 = vmatpush1.msra.mxu0 %v152
    %533 = vmatprep.subr.mxu0 %v161
    %534 = vmatpush1.msra.mxu0 %v160
    %535 = vmatprep.subr.mxu0 %v169
    %536 = vmatpush1.msra.mxu0 %v168
    %537 = vmatprep.subr.mxu0 %v177
    %538 = vmatpush1.msra.mxu0 %v176
    %539 = vmatprep.subr.mxu0 %v185
    %540 = vmatpush1.msra.mxu0 %v184
    %541 = vmatprep.subr.mxu0 %v193
    %542 = vmatpush1.msra.mxu0 %v192
    %543 = vmatprep.subr.mxu0 %v201
    %544 = vmatpush1.msra.mxu0 %v200
    %545 = vmatprep.subr.mxu0 %v209
    %546 = vmatpush1.msra.mxu0 %v208
    %547 = vmatprep.subr.mxu0 %v217
    %548 = vmatpush1.msra.mxu0 %v216
    %549 = vmatprep.subr.mxu0 %v225
    %550 = vmatpush1.msra.mxu0 %v224
    %551 = vmatprep.subr.mxu0 %v233
    %552 = vmatpush1.msra.mxu0 %v232
    %553 = vmatprep.subr.mxu0 %v241
    %554 = vmatpush1.msra.mxu0 %v240
    %555 = vmatprep.subr.mxu0 %v249
    %556 = vmatpush1.msra.mxu0 %v248
    %557 = vmatprep.subr.mxu0 %v257
    %558 = vmatpush1.msra.mxu0 %v256
    %559 = vmatprep.subr.mxu0 %v265
    %560 = vmatpush1.msra.mxu0 %v264
    %561 = vmatprep.subr.mxu0 %v273
    %562 = vmatpush1.msra.mxu0 %v272
    %563 = vmatprep.subr.mxu0 %v281
    %564 = vmatpush1.msra.mxu0 %v280
    %565 = vmatprep.subr.mxu0 %v289
    %566 = vmatpush1.msra.mxu0 %v288
    %567 = vmatprep.mubr.f32.mxu0 %v33
    %568 = vmatmul.mubr.f32.gmra.mrb[0].mxu0 %v32
    %v569 = vpop.f32.mrb[0].mxu0
    %v570 = vadd.f32 0.0, %v569
    %v571 = vpop.f32.mrb[0].mxu0
    %v572 = vadd.f32 0.0, %v571
    %573 = vdwg.mxu0
    %v574 = vld [vmem:[%s2] sm:$0xff]
    %v575 = vld [vmem:[%s2 + $0x8] sm:$0xff]
    %v576 = vld [vmem:[%s3] sm:$0xff]
    %v577 = vld [vmem:[%s3 + $0x8] sm:$0xff]
    %579 = vset.pattern.permute.xlu0 0
    %580 = vperm.xlu0 %579, %v576
    %v581 = vpop.permute.xlu0 %580
    %584 = vset.pattern.permute.xlu0 0
    %585 = vperm.xlu0 %584, %v577
    %v586 = vpop.permute.xlu0 %585
    %vm588 = vcmask 64512
    %v590 = vsel %vm588, %v574, 0
    %v593 = vsel %vm588, %v575, 0
    %595 = vmatprep.subr.mxu0 %v359
    %596 = vmatpush1.msra.mxu0 %v357
    %597 = vmatprep.subr.mxu0 0.0
    %598 = vmatpush1.msra.mxu0 0.0
    %599 = vmatprep.subr.mxu0 0.0
    %600 = vmatpush1.msra.mxu0 0.0
    %601 = vmatprep.subr.mxu0 0.0
    %602 = vmatpush1.msra.mxu0 0.0
    %603 = vmatprep.subr.mxu0 0.0
    %604 = vmatpush1.msra.mxu0 0.0
    %605 = vmatprep.subr.mxu0 0.0
    %606 = vmatpush1.msra.mxu0 0.0
    %607 = vmatprep.subr.mxu0 0.0
    %608 = vmatpush1.msra.mxu0 0.0
    %609 = vmatprep.subr.mxu0 0.0
    %610 = vmatpush1.msra.mxu0 0.0
    %611 = vmatprep.subr.mxu0 0.0
    %612 = vmatpush1.msra.mxu0 0.0
    %613 = vmatprep.subr.mxu0 0.0
    %614 = vmatpush1.msra.mxu0 0.0
    %615 = vmatprep.subr.mxu0 0.0
    %616 = vmatpush1.msra.mxu0 0.0
    %617 = vmatprep.subr.mxu0 0.0
    %618 = vmatpush1.msra.mxu0 0.0
    %619 = vmatprep.subr.mxu0 0.0
    %620 = vmatpush1.msra.mxu0 0.0
    %621 = vmatprep.subr.mxu0 0.0
    %622 = vmatpush1.msra.mxu0 0.0
    %623 = vmatprep.subr.mxu0 0.0
    %624 = vmatpush1.msra.mxu0 0.0
    %625 = vmatprep.subr.mxu0 0.0
    %626 = vmatpush1.msra.mxu0 0.0
    %627 = vmatprep.subr.mxu0 0.0
    %628 = vmatpush1.msra.mxu0 0.0
    %629 = vmatprep.subr.mxu0 0.0
    %630 = vmatpush1.msra.mxu0 0.0
    %631 = vmatprep.subr.mxu0 0.0
    %632 = vmatpush1.msra.mxu0 0.0
    %633 = vmatprep.subr.mxu0 0.0
    %634 = vmatpush1.msra.mxu0 0.0
    %635 = vmatprep.subr.mxu0 0.0
    %636 = vmatpush1.msra.mxu0 0.0
    %637 = vmatprep.subr.mxu0 0.0
    %638 = vmatpush1.msra.mxu0 0.0
    %639 = vmatprep.subr.mxu0 0.0
    %640 = vmatpush1.msra.mxu0 0.0
    %641 = vmatprep.subr.mxu0 0.0
    %642 = vmatpush1.msra.mxu0 0.0
    %643 = vmatprep.subr.mxu0 0.0
    %644 = vmatpush1.msra.mxu0 0.0
    %645 = vmatprep.subr.mxu0 0.0
    %646 = vmatpush1.msra.mxu0 0.0
    %647 = vmatprep.subr.mxu0 0.0
    %648 = vmatpush1.msra.mxu0 0.0
    %649 = vmatprep.subr.mxu0 0.0
    %650 = vmatpush1.msra.mxu0 0.0
    %651 = vmatprep.subr.mxu0 0.0
    %652 = vmatpush1.msra.mxu0 0.0
    %653 = vmatprep.subr.mxu0 0.0
    %654 = vmatpush1.msra.mxu0 0.0
    %655 = vmatprep.subr.mxu0 0.0
    %656 = vmatpush1.msra.mxu0 0.0
    %657 = vmatprep.subr.mxu0 0.0
    %658 = vmatpush1.msra.mxu0 0.0
    %659 = vmatprep.mubr.f32.mxu0 0.0
    %660 = vmatmul.mubr.f32.gmra.mrb[0].mxu0 %v590
    %v661 = vpop.f32.mrb[0].mxu0
    %v662 = vadd.f32 %v581, %v661
    %v663 = vpop.f32.mrb[0].mxu0
    %v664 = vadd.f32 %v581, %v663
    %665 = vmatprep.mubr.f32.mxu0 0.0
    %666 = vmatmul.mubr.f32.gmra.mrb[0].mxu0 %v593
    %v667 = vpop.f32.mrb[0].mxu0
    %v668 = vadd.f32 %v586, %v667
    %v669 = vpop.f32.mrb[0].mxu0
    %v670 = vadd.f32 %v586, %v669
    %671 = vdwg.mxu0
    %672 = vmatprep.subr.mxu0 %v430
    %673 = vmatpush1.msra.mxu0 %v428
    %674 = vmatprep.subr.mxu0 0.0
    %675 = vmatpush1.msra.mxu0 0.0
    %676 = vmatprep.subr.mxu0 0.0
    %677 = vmatpush1.msra.mxu0 0.0
    %678 = vmatprep.subr.mxu0 0.0
    %679 = vmatpush1.msra.mxu0 0.0
    %680 = vmatprep.subr.mxu0 0.0
    %681 = vmatpush1.msra.mxu0 0.0
    %682 = vmatprep.subr.mxu0 0.0
    %683 = vmatpush1.msra.mxu0 0.0
    %684 = vmatprep.subr.mxu0 0.0
    %685 = vmatpush1.msra.mxu0 0.0
    %686 = vmatprep.subr.mxu0 0.0
    %687 = vmatpush1.msra.mxu0 0.0
    %688 = vmatprep.subr.mxu0 0.0
    %689 = vmatpush1.msra.mxu0 0.0
    %690 = vmatprep.subr.mxu0 0.0
    %691 = vmatpush1.msra.mxu0 0.0
    %692 = vmatprep.subr.mxu0 0.0
    %693 = vmatpush1.msra.mxu0 0.0
    %694 = vmatprep.subr.mxu0 0.0
    %695 = vmatpush1.msra.mxu0 0.0
    %696 = vmatprep.subr.mxu0 0.0
    %697 = vmatpush1.msra.mxu0 0.0
    %698 = vmatprep.subr.mxu0 0.0
    %699 = vmatpush1.msra.mxu0 0.0
    %700 = vmatprep.subr.mxu0 0.0
    %701 = vmatpush1.msra.mxu0 0.0
    %702 = vmatprep.subr.mxu0 0.0
    %703 = vmatpush1.msra.mxu0 0.0
    %704 = vmatprep.subr.mxu0 0.0
    %705 = vmatpush1.msra.mxu0 0.0
    %706 = vmatprep.subr.mxu0 0.0
    %707 = vmatpush1.msra.mxu0 0.0
    %708 = vmatprep.subr.mxu0 0.0
    %709 = vmatpush1.msra.mxu0 0.0
    %710 = vmatprep.subr.mxu0 0.0
    %711 = vmatpush1.msra.mxu0 0.0
    %712 = vmatprep.subr.mxu0 0.0
    %713 = vmatpush1.msra.mxu0 0.0
    %714 = vmatprep.subr.mxu0 0.0
    %715 = vmatpush1.msra.mxu0 0.0
    %716 = vmatprep.subr.mxu0 0.0
    %717 = vmatpush1.msra.mxu0 0.0
    %718 = vmatprep.subr.mxu0 0.0
    %719 = vmatpush1.msra.mxu0 0.0
    %720 = vmatprep.subr.mxu0 0.0
    %721 = vmatpush1.msra.mxu0 0.0
    %722 = vmatprep.subr.mxu0 0.0
    %723 = vmatpush1.msra.mxu0 0.0
    %724 = vmatprep.subr.mxu0 0.0
    %725 = vmatpush1.msra.mxu0 0.0
    %726 = vmatprep.subr.mxu0 0.0
    %727 = vmatpush1.msra.mxu0 0.0
    %728 = vmatprep.subr.mxu0 0.0
    %729 = vmatpush1.msra.mxu0 0.0
    %730 = vmatprep.subr.mxu0 0.0
    %731 = vmatpush1.msra.mxu0 0.0
    %732 = vmatprep.subr.mxu0 0.0
    %733 = vmatpush1.msra.mxu0 0.0
    %734 = vmatprep.subr.mxu0 0.0
    %735 = vmatpush1.msra.mxu0 0.0
    %736 = vmatprep.mubr.f32.mxu0 0.0
    %737 = vmatmul.mubr.f32.gmra.mrb[0].mxu0 %v590
    %v738 = vpop.f32.mrb[0].mxu0
    %v739 = vadd.f32 %v581, %v738
    %v740 = vpop.f32.mrb[0].mxu0
    %v741 = vadd.f32 %v581, %v740
    %742 = vmatprep.mubr.f32.mxu0 0.0
    %743 = vmatmul.mubr.f32.gmra.mrb[0].mxu0 %v593
    %v744 = vpop.f32.mrb[0].mxu0
    %v745 = vadd.f32 %v586, %v744
    %v746 = vpop.f32.mrb[0].mxu0
    %v747 = vadd.f32 %v586, %v746
    %748 = vdwg.mxu0
    %749 = vmatprep.subr.mxu0 %v501
    %750 = vmatpush1.msra.mxu0 %v499
    %751 = vmatprep.subr.mxu0 0.0
    %752 = vmatpush1.msra.mxu0 0.0
    %753 = vmatprep.subr.mxu0 0.0
    %754 = vmatpush1.msra.mxu0 0.0
    %755 = vmatprep.subr.mxu0 0.0
    %756 = vmatpush1.msra.mxu0 0.0
    %757 = vmatprep.subr.mxu0 0.0
    %758 = vmatpush1.msra.mxu0 0.0
    %759 = vmatprep.subr.mxu0 0.0
    %760 = vmatpush1.msra.mxu0 0.0
    %761 = vmatprep.subr.mxu0 0.0
    %762 = vmatpush1.msra.mxu0 0.0
    %763 = vmatprep.subr.mxu0 0.0
    %764 = vmatpush1.msra.mxu0 0.0
    %765 = vmatprep.subr.mxu0 0.0
    %766 = vmatpush1.msra.mxu0 0.0
    %767 = vmatprep.subr.mxu0 0.0
    %768 = vmatpush1.msra.mxu0 0.0
    %769 = vmatprep.subr.mxu0 0.0
    %770 = vmatpush1.msra.mxu0 0.0
    %771 = vmatprep.subr.mxu0 0.0
    %772 = vmatpush1.msra.mxu0 0.0
    %773 = vmatprep.subr.mxu0 0.0
    %774 = vmatpush1.msra.mxu0 0.0
    %775 = vmatprep.subr.mxu0 0.0
    %776 = vmatpush1.msra.mxu0 0.0
    %777 = vmatprep.subr.mxu0 0.0
    %778 = vmatpush1.msra.mxu0 0.0
    %779 = vmatprep.subr.mxu0 0.0
    %780 = vmatpush1.msra.mxu0 0.0
    %781 = vmatprep.subr.mxu0 0.0
    %782 = vmatpush1.msra.mxu0 0.0
    %783 = vmatprep.subr.mxu0 0.0
    %784 = vmatpush1.msra.mxu0 0.0
    %785 = vmatprep.subr.mxu0 0.0
    %786 = vmatpush1.msra.mxu0 0.0
    %787 = vmatprep.subr.mxu0 0.0
    %788 = vmatpush1.msra.mxu0 0.0
    %789 = vmatprep.subr.mxu0 0.0
    %790 = vmatpush1.msra.mxu0 0.0
    %791 = vmatprep.subr.mxu0 0.0
    %792 = vmatpush1.msra.mxu0 0.0
    %793 = vmatprep.subr.mxu0 0.0
    %794 = vmatpush1.msra.mxu0 0.0
    %795 = vmatprep.subr.mxu0 0.0
    %796 = vmatpush1.msra.mxu0 0.0
    %797 = vmatprep.subr.mxu0 0.0
    %798 = vmatpush1.msra.mxu0 0.0
    %799 = vmatprep.subr.mxu0 0.0
    %800 = vmatpush1.msra.mxu0 0.0
    %801 = vmatprep.subr.mxu0 0.0
    %802 = vmatpush1.msra.mxu0 0.0
    %803 = vmatprep.subr.mxu0 0.0
    %804 = vmatpush1.msra.mxu0 0.0
    %805 = vmatprep.subr.mxu0 0.0
    %806 = vmatpush1.msra.mxu0 0.0
    %807 = vmatprep.subr.mxu0 0.0
    %808 = vmatpush1.msra.mxu0 0.0
    %809 = vmatprep.subr.mxu0 0.0
    %810 = vmatpush1.msra.mxu0 0.0
    %811 = vmatprep.subr.mxu0 0.0
    %812 = vmatpush1.msra.mxu0 0.0
    %813 = vmatprep.mubr.f32.mxu0 0.0
    %814 = vmatmul.mubr.f32.gmra.mrb[0].mxu0 %v590
    %v815 = vpop.f32.mrb[0].mxu0
    %v816 = vadd.f32 %v581, %v815
    %v817 = vpop.f32.mrb[0].mxu0
    %v818 = vadd.f32 %v581, %v817
    %819 = vmatprep.mubr.f32.mxu0 0.0
    %820 = vmatmul.mubr.f32.gmra.mrb[0].mxu0 %v593
    %v821 = vpop.f32.mrb[0].mxu0
    %v822 = vadd.f32 %v586, %v821
    %v823 = vpop.f32.mrb[0].mxu0
    %v824 = vadd.f32 %v586, %v823
    %825 = vdwg.mxu0
    %826 = vmatprep.subr.mxu0 %v572
    %827 = vmatpush1.msra.mxu0 %v570
    %828 = vmatprep.subr.mxu0 0.0
    %829 = vmatpush1.msra.mxu0 0.0
    %830 = vmatprep.subr.mxu0 0.0
    %831 = vmatpush1.msra.mxu0 0.0
    %832 = vmatprep.subr.mxu0 0.0
    %833 = vmatpush1.msra.mxu0 0.0
    %834 = vmatprep.subr.mxu0 0.0
    %835 = vmatpush1.msra.mxu0 0.0
    %836 = vmatprep.subr.mxu0 0.0
    %837 = vmatpush1.msra.mxu0 0.0
    %838 = vmatprep.subr.mxu0 0.0
    %839 = vmatpush1.msra.mxu0 0.0
    %840 = vmatprep.subr.mxu0 0.0
    %841 = vmatpush1.msra.mxu0 0.0
    %842 = vmatprep.subr.mxu0 0.0
    %843 = vmatpush1.msra.mxu0 0.0
    %844 = vmatprep.subr.mxu0 0.0
    %845 = vmatpush1.msra.mxu0 0.0
    %846 = vmatprep.subr.mxu0 0.0
    %847 = vmatpush1.msra.mxu0 0.0
    %848 = vmatprep.subr.mxu0 0.0
    %849 = vmatpush1.msra.mxu0 0.0
    %850 = vmatprep.subr.mxu0 0.0
    %851 = vmatpush1.msra.mxu0 0.0
    %852 = vmatprep.subr.mxu0 0.0
    %853 = vmatpush1.msra.mxu0 0.0
    %854 = vmatprep.subr.mxu0 0.0
    %855 = vmatpush1.msra.mxu0 0.0
    %856 = vmatprep.subr.mxu0 0.0
    %857 = vmatpush1.msra.mxu0 0.0
    %858 = vmatprep.subr.mxu0 0.0
    %859 = vmatpush1.msra.mxu0 0.0
    %860 = vmatprep.subr.mxu0 0.0
    %861 = vmatpush1.msra.mxu0 0.0
    %862 = vmatprep.subr.mxu0 0.0
    %863 = vmatpush1.msra.mxu0 0.0
    %864 = vmatprep.subr.mxu0 0.0
    %865 = vmatpush1.msra.mxu0 0.0
    %866 = vmatprep.subr.mxu0 0.0
    %867 = vmatpush1.msra.mxu0 0.0
    %868 = vmatprep.subr.mxu0 0.0
    %869 = vmatpush1.msra.mxu0 0.0
    %870 = vmatprep.subr.mxu0 0.0
    %871 = vmatpush1.msra.mxu0 0.0
    %872 = vmatprep.subr.mxu0 0.0
    %873 = vmatpush1.msra.mxu0 0.0
    %874 = vmatprep.subr.mxu0 0.0
    %875 = vmatpush1.msra.mxu0 0.0
    %876 = vmatprep.subr.mxu0 0.0
    %877 = vmatpush1.msra.mxu0 0.0
    %878 = vmatprep.subr.mxu0 0.0
    %879 = vmatpush1.msra.mxu0 0.0
    %880 = vmatprep.subr.mxu0 0.0
    %881 = vmatpush1.msra.mxu0 0.0
    %882 = vmatprep.subr.mxu0 0.0
    %883 = vmatpush1.msra.mxu0 0.0
    %884 = vmatprep.subr.mxu0 0.0
    %885 = vmatpush1.msra.mxu0 0.0
    %886 = vmatprep.subr.mxu0 0.0
    %887 = vmatpush1.msra.mxu0 0.0
    %888 = vmatprep.subr.mxu0 0.0
    %889 = vmatpush1.msra.mxu0 0.0
    %890 = vmatprep.mubr.f32.mxu0 0.0
    %891 = vmatmul.mubr.f32.gmra.mrb[0].mxu0 %v590
    %v892 = vpop.f32.mrb[0].mxu0
    %v893 = vadd.f32 %v581, %v892
    %v894 = vpop.f32.mrb[0].mxu0
    %v895 = vadd.f32 %v581, %v894
    %896 = vmatprep.mubr.f32.mxu0 0.0
    %897 = vmatmul.mubr.f32.gmra.mrb[0].mxu0 %v593
    %v898 = vpop.f32.mrb[0].mxu0
    %v899 = vadd.f32 %v586, %v898
    %v900 = vpop.f32.mrb[0].mxu0
    %v901 = vadd.f32 %v586, %v900
    %902 = vdwg.mxu0
    %903 = vst [vmem:[#allocation5] sm:$0xff] %v662
    %904 = vst [vmem:[#allocation5 + $0x8] sm:$0xff] %v664
    %905 = vst [vmem:[#allocation5 + $0x10] sm:$0xff] %v739
    %906 = vst [vmem:[#allocation5 + $0x18] sm:$0xff] %v741
    %907 = vst [vmem:[#allocation5 + $0x20] sm:$0xff] %v816
    %908 = vst [vmem:[#allocation5 + $0x28] sm:$0xff] %v818
    %909 = vst [vmem:[#allocation5 + $0x30] sm:$0xff] %v893
    %910 = vst [vmem:[#allocation5 + $0x38] sm:$0xff] %v895
    %911 = vst [vmem:[#allocation5 + $0x40] sm:$0xff] %v668
    %912 = vst [vmem:[#allocation5 + $0x48] sm:$0xff] %v670
    %913 = vst [vmem:[#allocation5 + $0x50] sm:$0xff] %v745
    %914 = vst [vmem:[#allocation5 + $0x58] sm:$0xff] %v747
    %915 = vst [vmem:[#allocation5 + $0x60] sm:$0xff] %v822
    %916 = vst [vmem:[#allocation5 + $0x68] sm:$0xff] %v824
    %917 = vst [vmem:[#allocation5 + $0x70] sm:$0xff] %v899
    %918 = vst [vmem:[#allocation5 + $0x78] sm:$0xff] %v901
    // Predicated region
    $region22: #{tpu_custom_call.1} parent=1 // pred_check
      _
    $region23: #{tpu_custom_call.1} parent=1 // pred_check_branch
      %920 = sbr.rel (0) target = $region25
    $region24: #{tpu_custom_call.1} parent=1 // pred_region
      %s922 = ssub.s32 2048, 2048
      %923 = vsyncadd [#allocation4], %s922
      %s924 = sshll.u32 [#allocation5], 4
      %s925 = int_to_ptr.vmem [resolvable:$true] %s924
      %930 = dma.vmem_to_hbm [thread:$0]  %s925, 2048, %s4, [#allocation4], 1024, 1024, 64
    $region25: #{tpu_custom_call.1} parent=1 // pred_fallthru
      _
    // Predicated region
    $region26: #{tpu_custom_call.1} parent=1 // pred_check
      _
    $region27: #{tpu_custom_call.1} parent=1 // pred_check_branch
      %932 = sbr.rel (0) target = $region29
    $region28: #{tpu_custom_call.1} parent=1 // pred_region
      %933 = dma.done [#allocation4], 2048
    $region29: #{tpu_custom_call.1} parent=1 // pred_fallthru
      _
    %934 = vsyncpa [#allocation3], 1
    %935 = vsyncpa [#allocation4], 1

</llo_original>
